<compile_context>
chip_gen: v5e
topology: v5e:2x2
jax: 0.10.0
libtpu: 0.0.40
codegen_flags: <defaults>
</compile_context>

<pallas_src>
import functools
import math

import jax
import jax.numpy as jnp
from jax import lax
from jax.experimental import pallas as pl
from jax.experimental.pallas import tpu as pltpu


def _round_up(a, b):
    return (a + b - 1) // b * b


def _sublane_multiple(dtype):
    # Minimum (sublane, lane) tile: f32 -> (8,128), bf16 -> (16,128), 8-bit -> (32,128).
    return max(8, 32 // jnp.dtype(dtype).itemsize)


def _device_defaults():
    """Return (tn, tv, vmem_limit_bytes) tuned per TPU generation."""
    kind = ""
    try:
        kind = jax.devices()[0].device_kind.lower()
    except Exception:
        pass
    if "v5 lite" in kind or "v5lite" in kind or "v5e" in kind:
        # Crossover ~240 FLOPs/byte; giant tiles buy little. Raise the small
        # default scoped VMEM.
        return 512, 512, 64 * 1024 * 1024
    if "v7" in kind:
        # 64 MiB VMEM per TensorCore -> moderate tn; big tv amortizes grid steps.
        return 512, 1024, 48 * 1024 * 1024
    if "v6" in kind:
        # 128 MiB VMEM, crossover ~650 FLOPs/byte -> big row tiles.
        return 1024, 1024, 96 * 1024 * 1024
    # Unknown generation: conservative, safe on every chip.
    return 512, 512, 48 * 1024 * 1024


def _vmem_estimate(tn, tv, D, x_bytes, w_bytes):
    est = 2 * tn * D * x_bytes            # x tile (double-buffered)
    est += 2 * tv * D * w_bytes           # weight tile (double-buffered)
    est += 2 * max(tv, 128) * 4           # bias tile
    est += (2 + 2 + 3) * tn * 128 * 4     # idx + out + 3 scratches (lane-padded)
    est += 4 * tn * tv * 4                # f32 logits tile + elementwise temps
    return est


def _flce_kernel(idx_ref, x_ref, w_ref, *rest, ignore_index, has_bias):
    if has_bias:
        b_ref, nll_ref, m_sc, l_sc, sidx_sc = rest
    else:
        b_ref = None
        nll_ref, m_sc, l_sc, sidx_sc = rest

    vi = pl.program_id(1)
    tv = w_ref.shape[0]
    chunk_start = vi * tv

    @pl.when(vi == 0)
    def _():
        m_sc[...] = jnp.full_like(m_sc, -jnp.inf)
        l_sc[...] = jnp.zeros_like(l_sc)
        sidx_sc[...] = jnp.zeros_like(sidx_sc)

    # (tn, tv) logits for this vocab chunk.  Contraction on the last dim of
    # BOTH operands (A @ B.T pattern) -> no in-kernel weight transpose; the MXU
    # accumulates in f32 regardless of input dtype.
    s = lax.dot_general(
        x_ref[...], w_ref[...],
        dimension_numbers=(((1,), (1,)), ((), ())),
        preferred_element_type=jnp.float32)
    if has_bias:
        # (1, tv) broadcast add; padded vocab columns carry -1e30 here, so no
        # separate mask pass is needed.
        s = s + b_ref[...]

    # Gather target logit: a single compare against the global column index.
    # Out-of-chunk targets (and ignore_index) can never match, so no range
    # check is needed.
    idx = idx_ref[...]                                          # (tn, 1) int32
    col = lax.broadcasted_iota(jnp.int32, s.shape, 1) + chunk_start
    hit = col == idx                                            # (tn, tv)
    sidx_sc[...] += jnp.sum(jnp.where(hit, s, 0.0), axis=1, keepdims=True)

    # Online logsumexp accumulation across vocab chunks (all f32).
    m_new = jnp.maximum(m_sc[...], jnp.max(s, axis=1, keepdims=True))
    l_sc[...] = (l_sc[...] * jnp.exp(m_sc[...] - m_new)
                 + jnp.sum(jnp.exp(s - m_new), axis=1, keepdims=True))
    m_sc[...] = m_new

    @pl.when(vi == pl.num_programs(1) - 1)
    def _():
        lse = jnp.log(l_sc[...]) + m_sc[...]                    # (tn, 1)
        nll = lse - sidx_sc[...]
        nll_ref[...] = jnp.where(idx == ignore_index,
                                 jnp.zeros_like(nll), nll)


def fused_linear_cross_entropy_fwd_pallas(x, weight, bias, idx,
                                          ignore_index=-100,
                                          tn=None, tv=None,
                                          vmem_limit_bytes=None,
                                          matmul_dtype=None):
    """Per-row negative log-softmax (nll) loss, shape (N,), float32.

    x:      (N, D) float (bf16 recommended; pass matmul_dtype=jnp.bfloat16 to
            down-cast f32 callers -- accumulation/stats stay f32 in-kernel)
    weight: (V, D) same dtype family as x
    bias:   (V,) or None
    idx:    (N,) int targets
    """
    N, D = x.shape
    V, D2 = weight.shape
    assert D == D2

    if matmul_dtype is not None:
        x = x.astype(matmul_dtype)
        weight = weight.astype(matmul_dtype)
    if weight.dtype != x.dtype:
        weight = weight.astype(x.dtype)

    d_tn, d_tv, d_vmem = _device_defaults()
    tn = d_tn if tn is None else tn
    tv = d_tv if tv is None else tv
    vmem_limit_bytes = d_vmem if vmem_limit_bytes is None else vmem_limit_bytes

    # Clamp tiles for small problems while keeping dtype-dependent alignment.
    sub = _sublane_multiple(x.dtype)
    tn = _round_up(min(tn, _round_up(N, sub)), sub)
    tv = _round_up(min(tv, _round_up(V, 128)), 128)

    # Megacore (v7x): prefer >= 2 row tiles so both TensorCores get a shard
    # (near-free elsewhere -- one extra grid step).
    n_round = _round_up(N, sub)
    if n_round // tn < 2 and n_round >= max(256, 2 * sub):
        tn = _round_up(-(-n_round // 2), sub)

    # Shrink tiles until the double-buffered working set fits the VMEM budget.
    # Shrink tv first (only costs per-grid-step overhead); tn last (it carries
    # the weight-reuse / arithmetic-intensity win).
    x_bytes = jnp.dtype(x.dtype).itemsize
    w_bytes = jnp.dtype(weight.dtype).itemsize
    budget = int(0.8 * vmem_limit_bytes)
    while _vmem_estimate(tn, tv, D, x_bytes, w_bytes) > budget:
        if tv > 256:
            tv = _round_up(tv // 2, 128)
        elif tn > 256:
            tn = _round_up(tn // 2, sub)
        elif tv > 128:
            tv = 128
        elif tn > sub:
            tn = _round_up(tn // 2, sub)
        else:
            break
    # TODO(synk): for v7x with very large D (>=8K), add a D/K grid axis (or
    # pltpu.emit_pipeline over D chunks) so x/W tiles no longer carry full D.

    n_pad = _round_up(N, tn)
    v_pad = _round_up(V, tv)

    # Pad rows: zero activations; padded rows are sliced off the output.
    if n_pad != N:
        x = jnp.pad(x, ((0, n_pad - N), (0, 0)))
        idx = jnp.pad(idx, (0, n_pad - N))
    # Pad vocab: zero weight rows; the matching bias columns get -1e30 so the
    # padded logits never win the max and contribute exp(..) == 0.
    if v_pad != V:
        weight = jnp.pad(weight, ((0, v_pad - V), (0, 0)))

    has_bias = (bias is not None) or (v_pad != V)

    idx2d = jnp.asarray(idx, jnp.int32).reshape(n_pad, 1)
    args = [idx2d, x, weight]
    in_specs = [
        pl.BlockSpec((tn, 1), lambda n, v: (n, 0)),   # idx (row-resident)
        pl.BlockSpec((tn, D), lambda n, v: (n, 0)),   # x row tile
        pl.BlockSpec((tv, D), lambda n, v: (v, 0)),   # weight vocab chunk
    ]
    if has_bias:
        if bias is None:
            bias2d = jnp.zeros((1, V), jnp.float32)
        else:
            bias2d = bias.astype(jnp.float32).reshape(1, V)
        if v_pad != V:
            bias2d = jnp.pad(bias2d, ((0, 0), (0, v_pad - V)),
                             constant_values=-1e30)
        args.append(bias2d)
        in_specs.append(pl.BlockSpec((1, tv), lambda n, v: (0, v)))

    kernel = functools.partial(_flce_kernel,
                               ignore_index=ignore_index,
                               has_bias=has_bias)

    nll = pl.pallas_call(
        kernel,
        out_shape=jax.ShapeDtypeStruct((n_pad, 1), jnp.float32),
        grid_spec=pltpu.PrefetchScalarGridSpec(
            num_scalar_prefetch=0,
            grid=(n_pad // tn, v_pad // tv),
            in_specs=in_specs,
            out_specs=pl.BlockSpec((tn, 1), lambda n, v: (n, 0)),
            scratch_shapes=[
                pltpu.VMEM((tn, 1), jnp.float32),  # running max
                pltpu.VMEM((tn, 1), jnp.float32),  # running sumexp
                pltpu.VMEM((tn, 1), jnp.float32),  # gathered target logit
            ],
        ),
        compiler_params=pltpu.CompilerParams(
            dimension_semantics=("parallel", "arbitrary"),
            vmem_limit_bytes=vmem_limit_bytes),
    )(*args)
    return nll[:N, 0]


def fused_linear_cross_entropy(x, weight, bias, idx,
                               ignore_index=-100, reduction="mean",
                               dtype=jnp.float32, tn=None, tv=None,
                               matmul_dtype=None):
    nll = fused_linear_cross_entropy_fwd_pallas(
        x, weight, bias, idx, ignore_index, tn=tn, tv=tv,
        matmul_dtype=matmul_dtype)
    if reduction == "none":
        return nll.astype(dtype)
    if reduction == "sum":
        return jnp.sum(nll).astype(dtype)
    # NOTE: if every target equals ignore_index this is 0/0 -> NaN, matching
    # PyTorch's behaviour.
    count = jnp.sum(idx != ignore_index)
    return (jnp.sum(nll) / count).astype(dtype)


class FusedLinearCrossEntropy:
    """Minimal JAX port of the PyTorch module (forward only)."""

    def __init__(self, in_features, out_features, bias=True, key=None,
                 dtype=jnp.float32):
        self.in_features = in_features
        self.out_features = out_features
        key = jax.random.PRNGKey(0) if key is None else key
        kw, kb = jax.random.split(key)
        # kaiming_uniform(a=sqrt(5)) on (out, in) -> bound = 1/sqrt(in)
        bound = 1.0 / math.sqrt(in_features)
        self.weight = jax.random.uniform(
            kw, (out_features, in_features), jnp.float32, -bound, bound
        ).astype(dtype)
        self.bias = (jax.random.uniform(
            kb, (out_features,), jnp.float32, -bound, bound).astype(dtype)
            if bias else None)

    def __call__(self, x, idx=None, ignore_index=-100, reduction="mean",
                 dtype=jnp.float32):
        if idx is None:
            out = jnp.dot(x, self.weight.T,
                          preferred_element_type=jnp.float32)
            if self.bias is not None:
                out = out + self.bias
            return out.astype(x.dtype)
        return fused_linear_cross_entropy(x, self.weight, self.bias, idx,
                                          ignore_index, reduction, dtype)


def _reference_loss(x, w, b, idx, ignore_index, reduction):
    logits = (x.astype(jnp.float32) @ w.astype(jnp.float32).T
              + b.astype(jnp.float32))                       # (N, V)
    lse = jax.scipy.special.logsumexp(logits, axis=1)
    tgt = jnp.take_along_axis(
        logits, jnp.clip(idx, 0, w.shape[0] - 1)[:, None], axis=1)[:, 0]
    nll = jnp.where(idx == ignore_index, 0.0, lse - tgt)
    if reduction == "none":
        return nll
    if reduction == "sum":
        return jnp.sum(nll)
    return jnp.sum(nll) / jnp.sum(idx != ignore_index)


if __name__ == "__main__":
    key = jax.random.PRNGKey(0)
    k_x, k_idx, k_mod, k_w2, k_idx2 = jax.random.split(key, 5)

    # deliberately non-divisible shapes to exercise the padding/masking path
    N, D, V = 13, 64, 500
    ignore_index = -100

    x = jax.random.normal(k_x, (N, D), jnp.float32)
    idx = jax.random.randint(k_idx, (N,), 0, V, jnp.int32)
    idx = idx.at[3].set(ignore_index).at[11].set(ignore_index)

    mod = FusedLinearCrossEntropy(D, V, bias=True, key=k_mod)

    # --- float32 path (with bias, padded vocab) ---
    loss = jax.block_until_ready(
        mod(x, idx, ignore_index=ignore_index, reduction="mean"))
    ref = _reference_loss(x, mod.weight, mod.bias, idx, ignore_index, "mean")
    assert jnp.allclose(loss, ref, rtol=1e-4, atol=1e-4), (loss, ref)

    nll = jax.block_until_ready(
        mod(x, idx, ignore_index=ignore_index, reduction="none"))
    ref_nll = _reference_loss(x, mod.weight, mod.bias, idx, ignore_index,
                              "none")
    assert jnp.allclose(nll, ref_nll, rtol=1e-4, atol=1e-4)

    # --- bfloat16 operands (f32 accumulation / stats inside the kernel) ---
    x_bf = x.astype(jnp.bfloat16)
    w_bf = mod.weight.astype(jnp.bfloat16)
    nll_bf = jax.block_until_ready(
        fused_linear_cross_entropy(x_bf, w_bf, mod.bias, idx,
                                   ignore_index, "none"))
    ref_bf = _reference_loss(x_bf, w_bf, mod.bias, idx, ignore_index, "none")
    assert jnp.allclose(nll_bf, ref_bf, rtol=2e-2, atol=2e-2), (nll_bf, ref_bf)

    # --- no-bias, lane-aligned vocab -> exercises the bias-free kernel path ---
    V2 = 512
    w2 = (jax.random.normal(k_w2, (V2, D), jnp.float32) * 0.05)
    idx2 = jax.random.randint(k_idx2, (N,), 0, V2, jnp.int32)
    nll2 = jax.block_until_ready(
        fused_linear_cross_entropy(x, w2, None, idx2, ignore_index, "none"))
    ref2 = _reference_loss(x, w2, jnp.zeros((V2,), jnp.float32), idx2,
                           ignore_index, "none")
    assert jnp.allclose(nll2, ref2, rtol=1e-4, atol=1e-4), (nll2, ref2)

    print("KERNEL_OK")
</pallas_src>

<mosaic_0001>
module attributes {stable_mosaic.version = 11 : i64} {
  func.func @_flce_kernel(%arg0: i32, %arg1: i32, %arg2: memref<16x1xi32, #tpu.memory_space<vmem>>, %arg3: memref<16x64xf32, #tpu.memory_space<vmem>>, %arg4: memref<512x64xf32, #tpu.memory_space<vmem>>, %arg5: memref<1x512xf32, #tpu.memory_space<vmem>>, %arg6: memref<16x1xf32, #tpu.memory_space<vmem>>, %arg7: memref<16x1xf32, #tpu.memory_space<vmem>>, %arg8: memref<16x1xf32, #tpu.memory_space<vmem>>, %arg9: memref<16x1xf32, #tpu.memory_space<vmem>>) attributes {dimension_semantics = [#tpu.dimension_semantics<parallel>, #tpu.dimension_semantics<arbitrary>], iteration_bounds = array<i64: 1, 1>, scalar_prefetch = 0 : i64, scratch_operands = 3 : i64, tpu.core_type = #tpu.core_type<tc>, window_params = [{transform_indices = @transform_0, window_bounds = array<i64: 16, 1>}, {transform_indices = @transform_1, window_bounds = array<i64: 16, 64>}, {transform_indices = @transform_2, window_bounds = array<i64: 512, 64>}, {transform_indices = @transform_3, window_bounds = array<i64: 1, 512>}, {transform_indices = @transform_4, window_bounds = array<i64: 16, 1>}]} {
    %c512_i32 = arith.constant 512 : i32
    %0 = arith.muli %arg1, %c512_i32 : i32
    %c0_i32 = arith.constant 0 : i32
    %1 = arith.cmpi eq, %arg1, %c0_i32 : i32
    %2 = arith.extui %1 : i1 to i32
    %c0_i32_0 = arith.constant 0 : i32
    %3 = arith.cmpi ne, %2, %c0_i32_0 : i32
    scf.if %3 {
      %cst_28 = arith.constant 0xFF800000 : f32
      %43 = vector.broadcast %cst_28 : f32 to vector<16x1xf32>
      %c0_29 = arith.constant 0 : index
      %c0_30 = arith.constant 0 : index
      %44 = vector.load %arg7[%c0_29, %c0_30] : memref<16x1xf32, #tpu.memory_space<vmem>>, vector<16x1xf32>
      tpu.vector_store %arg7[%c0_29, %c0_30], %43 {strides = array<i32>} : memref<16x1xf32, #tpu.memory_space<vmem>>, vector<16x1xf32>,
      %cst_31 = arith.constant 0.000000e+00 : f32
      %45 = vector.broadcast %cst_31 : f32 to vector<16x1xf32>
      %c0_32 = arith.constant 0 : index
      %c0_33 = arith.constant 0 : index
      %46 = vector.load %arg8[%c0_32, %c0_33] : memref<16x1xf32, #tpu.memory_space<vmem>>, vector<16x1xf32>
      tpu.vector_store %arg8[%c0_32, %c0_33], %45 {strides = array<i32>} : memref<16x1xf32, #tpu.memory_space<vmem>>, vector<16x1xf32>,
      %cst_34 = arith.constant 0.000000e+00 : f32
      %47 = vector.broadcast %cst_34 : f32 to vector<16x1xf32>
      %c0_35 = arith.constant 0 : index
      %c0_36 = arith.constant 0 : index
      %48 = vector.load %arg9[%c0_35, %c0_36] : memref<16x1xf32, #tpu.memory_space<vmem>>, vector<16x1xf32>
      tpu.vector_store %arg9[%c0_35, %c0_36], %47 {strides = array<i32>} : memref<16x1xf32, #tpu.memory_space<vmem>>, vector<16x1xf32>,
    } else {
    }
    %c0 = arith.constant 0 : index
    %c0_1 = arith.constant 0 : index
    %4 = vector.load %arg3[%c0, %c0_1] : memref<16x64xf32, #tpu.memory_space<vmem>>, vector<16x64xf32>
    %c0_2 = arith.constant 0 : index
    %c0_3 = arith.constant 0 : index
    %5 = vector.load %arg4[%c0_2, %c0_3] : memref<512x64xf32, #tpu.memory_space<vmem>>, vector<512x64xf32>
    %cst = arith.constant dense<0.000000e+00> : vector<16x512xf32>
    %6 = tpu.matmul %4, %5, %cst {dimension_numbers = #tpu.dot_dimension_numbers<[1], [1], [0], [0], [0, 0, 1, 0], [], []>} : vector<16x64xf32>, vector<512x64xf32>, vector<16x512xf32> -> vector<16x512xf32>
    %c0_4 = arith.constant 0 : index
    %c0_5 = arith.constant 0 : index
    %7 = vector.load %arg5[%c0_4, %c0_5] : memref<1x512xf32, #tpu.memory_space<vmem>>, vector<1x512xf32>
    %8 = vector.broadcast %7 : vector<1x512xf32> to vector<16x512xf32>
    %9 = arith.addf %6, %8 : vector<16x512xf32>
    %c0_6 = arith.constant 0 : index
    %c0_7 = arith.constant 0 : index
    %10 = vector.load %arg2[%c0_6, %c0_7] : memref<16x1xi32, #tpu.memory_space<vmem>>, vector<16x1xi32>
    %11 = tpu.iota {dimensions = array<i32: 1>} : vector<16x512xi32>
    %12 = vector.broadcast %0 : i32 to vector<16x512xi32>
    %13 = arith.addi %11, %12 : vector<16x512xi32>
    %14 = vector.broadcast %10 : vector<16x1xi32> to vector<16x512xi32>
    %15 = arith.cmpi eq, %13, %14 : vector<16x512xi32>
    %c0_8 = arith.constant 0 : index
    %c0_9 = arith.constant 0 : index
    %16 = vector.load %arg9[%c0_8, %c0_9] : memref<16x1xf32, #tpu.memory_space<vmem>>, vector<16x1xf32>
    %cst_10 = arith.constant 0.000000e+00 : f32
    %17 = vector.broadcast %cst_10 : f32 to vector<16x512xf32>
    %18 = arith.select %15, %9, %17 : vector<16x512xi1>, vector<16x512xf32>
    %cst_11 = arith.constant dense<0.000000e+00> : vector<16xf32>
    %19 = vector.multi_reduction <add>, %18, %cst_11 [1] : vector<16x512xf32> to vector<16xf32>
    %20 = vector.shape_cast %19 : vector<16xf32> to vector<16x1xf32>
    %21 = arith.addf %16, %20 : vector<16x1xf32>
    %c0_12 = arith.constant 0 : index
    %c0_13 = arith.constant 0 : index
    %22 = vector.load %arg9[%c0_12, %c0_13] : memref<16x1xf32, #tpu.memory_space<vmem>>, vector<16x1xf32>
    tpu.vector_store %arg9[%c0_12, %c0_13], %21 {strides = array<i32>} : memref<16x1xf32, #tpu.memory_space<vmem>>, vector<16x1xf32>,
    %c0_14 = arith.constant 0 : index
    %c0_15 = arith.constant 0 : index
    %23 = vector.load %arg7[%c0_14, %c0_15] : memref<16x1xf32, #tpu.memory_space<vmem>>, vector<16x1xf32>
    %cst_16 = arith.constant dense<0xFF800000> : vector<16xf32>
    %24 = vector.multi_reduction <maximumf>, %9, %cst_16 [1] : vector<16x512xf32> to vector<16xf32>
    %25 = vector.shape_cast %24 : vector<16xf32> to vector<16x1xf32>
    %26 = arith.maximumf %23, %25 : vector<16x1xf32>
    %c0_17 = arith.constant 0 : index
    %c0_18 = arith.constant 0 : index
    %27 = vector.load %arg8[%c0_17, %c0_18] : memref<16x1xf32, #tpu.memory_space<vmem>>, vector<16x1xf32>
    %c0_19 = arith.constant 0 : index
    %c0_20 = arith.constant 0 : index
    %28 = vector.load %arg7[%c0_19, %c0_20] : memref<16x1xf32, #tpu.memory_space<vmem>>, vector<16x1xf32>
    %29 = arith.subf %28, %26 : vector<16x1xf32>
    %30 = math.exp %29 : vector<16x1xf32>
    %31 = arith.mulf %27, %30 : vector<16x1xf32>
    %32 = vector.broadcast %26 : vector<16x1xf32> to vector<16x512xf32>
    %33 = arith.subf %9, %32 : vector<16x512xf32>
    %34 = math.exp %33 : vector<16x512xf32>
    %cst_21 = arith.constant dense<0.000000e+00> : vector<16xf32>
    %35 = vector.multi_reduction <add>, %34, %cst_21 [1] : vector<16x512xf32> to vector<16xf32>
    %36 = vector.shape_cast %35 : vector<16xf32> to vector<16x1xf32>
    %37 = arith.addf %31, %36 : vector<16x1xf32>
    %c0_22 = arith.constant 0 : index
    %c0_23 = arith.constant 0 : index
    %38 = vector.load %arg8[%c0_22, %c0_23] : memref<16x1xf32, #tpu.memory_space<vmem>>, vector<16x1xf32>
    tpu.vector_store %arg8[%c0_22, %c0_23], %37 {strides = array<i32>} : memref<16x1xf32, #tpu.memory_space<vmem>>, vector<16x1xf32>,
    %c0_24 = arith.constant 0 : index
    %c0_25 = arith.constant 0 : index
    %39 = vector.load %arg7[%c0_24, %c0_25] : memref<16x1xf32, #tpu.memory_space<vmem>>, vector<16x1xf32>
    tpu.vector_store %arg7[%c0_24, %c0_25], %26 {strides = array<i32>} : memref<16x1xf32, #tpu.memory_space<vmem>>, vector<16x1xf32>,
    %c0_i32_26 = arith.constant 0 : i32
    %40 = arith.cmpi eq, %arg1, %c0_i32_26 : i32
    %41 = arith.extui %40 : i1 to i32
    %c0_i32_27 = arith.constant 0 : i32
    %42 = arith.cmpi ne, %41, %c0_i32_27 : i32
    scf.if %42 {
      %c0_28 = arith.constant 0 : index
      %c0_29 = arith.constant 0 : index
      %43 = vector.load %arg8[%c0_28, %c0_29] : memref<16x1xf32, #tpu.memory_space<vmem>>, vector<16x1xf32>
      %44 = math.log %43 : vector<16x1xf32>
      %c0_30 = arith.constant 0 : index
      %c0_31 = arith.constant 0 : index
      %45 = vector.load %arg7[%c0_30, %c0_31] : memref<16x1xf32, #tpu.memory_space<vmem>>, vector<16x1xf32>
      %46 = arith.addf %44, %45 : vector<16x1xf32>
      %c0_32 = arith.constant 0 : index
      %c0_33 = arith.constant 0 : index
      %47 = vector.load %arg9[%c0_32, %c0_33] : memref<16x1xf32, #tpu.memory_space<vmem>>, vector<16x1xf32>
      %48 = arith.subf %46, %47 : vector<16x1xf32>
      %c-100_i32 = arith.constant -100 : i32
      %49 = vector.broadcast %c-100_i32 : i32 to vector<16x1xi32>
      %50 = arith.cmpi eq, %10, %49 : vector<16x1xi32>
      %cst_34 = arith.constant 0.000000e+00 : f32
      %51 = vector.broadcast %cst_34 : f32 to vector<16x1xf32>
      %52 = arith.select %50, %51, %48 : vector<16x1xi1>, vector<16x1xf32>
      %c0_35 = arith.constant 0 : index
      %c0_36 = arith.constant 0 : index
      %53 = vector.load %arg6[%c0_35, %c0_36] : memref<16x1xf32, #tpu.memory_space<vmem>>, vector<16x1xf32>
      tpu.vector_store %arg6[%c0_35, %c0_36], %52 {strides = array<i32>} : memref<16x1xf32, #tpu.memory_space<vmem>>, vector<16x1xf32>,
    } else {
    }
    return
  }
  func.func @transform_0(%arg0: i32, %arg1: i32) -> (i32, i32) {
    %c0_i32 = arith.constant 0 : i32
    %c0_i32_0 = arith.constant 0 : i32
    return %arg0, %c0_i32 : i32, i32
  }
  func.func @transform_1(%arg0: i32, %arg1: i32) -> (i32, i32) {
    %c0_i32 = arith.constant 0 : i32
    %c0_i32_0 = arith.constant 0 : i32
    return %arg0, %c0_i32 : i32, i32
  }
  func.func @transform_2(%arg0: i32, %arg1: i32) -> (i32, i32) {
    %c0_i32 = arith.constant 0 : i32
    %c0_i32_0 = arith.constant 0 : i32
    return %arg1, %c0_i32 : i32, i32
  }
  func.func @transform_3(%arg0: i32, %arg1: i32) -> (i32, i32) {
    %c0_i32 = arith.constant 0 : i32
    %c0_i32_0 = arith.constant 0 : i32
    return %c0_i32, %arg1 : i32, i32
  }
  func.func @transform_4(%arg0: i32, %arg1: i32) -> (i32, i32) {
    %c0_i32 = arith.constant 0 : i32
    %c0_i32_0 = arith.constant 0 : i32
    return %arg0, %c0_i32 : i32, i32
  }
}

</mosaic_0001>

<llo_original>
// kernel: tpu_custom_call.1
$region0: #{tpu_custom_call.1}
  #allocation0 [shape = 'u32[]', space=smem, size = 0x4, offset = 0x4, fixed_abs, tag = 'smem constant byte address 0x4 - core index']
  #allocation1 [shape = 'u32[72,128]{1,0:T(1,128)}', space=vmem, size = 0x9000, scoped, tag = 'internal scratch']
  #allocation2 [shape = 'f32[16,1]{1,0:T(8,128)}', space=vmem, size = 0x2000, scoped, tag = 'scratch operand']
  #allocation3 [shape = 'f32[16,1]{1,0:T(8,128)}', space=vmem, size = 0x2000, scoped, tag = 'scratch operand']
  #allocation4 [shape = 'f32[16,1]{1,0:T(8,128)}', space=vmem, size = 0x2000, scoped, tag = 'scratch operand']
  %s0 = inlined_call_operand.vmem [shape: s32[16,1], index: 0, kind: input, shape index: {}]
  %s1 = inlined_call_operand.vmem [shape: f32[16,64], index: 1, kind: input, shape index: {}]
  %s2 = inlined_call_operand.vmem [shape: f32[512,64], index: 2, kind: input, shape index: {}]
  %s3 = inlined_call_operand.vmem [shape: f32[1,512], index: 3, kind: input, shape index: {}]
  %s4 = inlined_call_operand.vmem [shape: f32[16,1], index: 4, kind: output, shape index: {}]
  %s5 = sld [smem:[#allocation0]]
  $region34: #{tpu_custom_call.1} parent=0
    _
  %s7 = ssub.s32 1, %s5
  %s8 = scalar_select 0, %s7, %s5
  // Predicated region
  $region2: #{tpu_custom_call.1} parent=0 // pred_check
    _
  $region3: #{tpu_custom_call.1} parent=0 // pred_check_branch
    %10 = sbr.rel (0) target = $region5
  $region4: #{tpu_custom_call.1} parent=0 // pred_region
    _
  $region5: #{tpu_custom_call.1} parent=0 // pred_fallthru
    _
  // Predicated region
  $region6: #{tpu_custom_call.1} parent=0 // pred_check
    _
  $region7: #{tpu_custom_call.1} parent=0 // pred_check_branch
    %12 = sbr.rel (0) target = $region9
  $region8: #{tpu_custom_call.1} parent=0 // pred_region
    _
  $region9: #{tpu_custom_call.1} parent=0 // pred_fallthru
    _
  // Predicated region
  $region10: #{tpu_custom_call.1} parent=0 // pred_check
    _
  $region11: #{tpu_custom_call.1} parent=0 // pred_check_branch
    %14 = sbr.rel (0) target = $region13
  $region12: #{tpu_custom_call.1} parent=0 // pred_region
    _
  $region13: #{tpu_custom_call.1} parent=0 // pred_fallthru
    _
  // Predicated region
  $region14: #{tpu_custom_call.1} parent=0 // pred_check
    _
  $region15: #{tpu_custom_call.1} parent=0 // pred_check_branch
    %16 = sbr.rel (0) target = $region17
  $region16: #{tpu_custom_call.1} parent=0 // pred_region
    _
  $region17: #{tpu_custom_call.1} parent=0 // pred_fallthru
    _
  %s17 = smul.u32 0, 512
  %p18 = scmp.eq.s32.totalorder 0, 0
  // Predicated region
  $region18: #{tpu_custom_call.1} parent=0 // pred_check
    %p19 = pneg %p18
  $region19: #{tpu_custom_call.1} parent=0 // pred_check_branch
    %21 = sbr.rel (%p19) target = $region21
  $region20: #{tpu_custom_call.1} parent=0 // pred_region
    %vm22 = vcmask 7168
    %23 = vst.msk [vmem:[#allocation2] sm:$0xff] %vm22, -inf
    %24 = vst.msk [vmem:[#allocation2 + $0x8] sm:$0xff] %vm22, -inf
    %25 = vst.msk [vmem:[#allocation3] sm:$0xff] %vm22, 0.0
    %26 = vst.msk [vmem:[#allocation3 + $0x8] sm:$0xff] %vm22, 0.0
    %27 = vst.msk [vmem:[#allocation4] sm:$0xff] %vm22, 0.0
    %28 = vst.msk [vmem:[#allocation4 + $0x8] sm:$0xff] %vm22, 0.0
  $region21: #{tpu_custom_call.1} parent=0 // pred_fallthru
    _
  %v29 = vld [vmem:[%s1] sm:$0xff]
  %v30 = vld [vmem:[%s1 + $0x8] sm:$0xff]
  %v31 = vld [vmem:[%s2] sm:$0xff]
  %v32 = vld [vmem:[%s2 + $0x8] sm:$0xff]
  %v33 = vld [vmem:[%s2 + $0x10] sm:$0xff]
  %v34 = vld [vmem:[%s2 + $0x18] sm:$0xff]
  %v35 = vld [vmem:[%s2 + $0x20] sm:$0xff]
  %v36 = vld [vmem:[%s2 + $0x28] sm:$0xff]
  %v37 = vld [vmem:[%s2 + $0x30] sm:$0xff]
  %v38 = vld [vmem:[%s2 + $0x38] sm:$0xff]
  %v39 = vld [vmem:[%s2 + $0x40] sm:$0xff]
  %v40 = vld [vmem:[%s2 + $0x48] sm:$0xff]
  %v41 = vld [vmem:[%s2 + $0x50] sm:$0xff]
  %v42 = vld [vmem:[%s2 + $0x58] sm:$0xff]
  %v43 = vld [vmem:[%s2 + $0x60] sm:$0xff]
  %v44 = vld [vmem:[%s2 + $0x68] sm:$0xff]
  %v45 = vld [vmem:[%s2 + $0x70] sm:$0xff]
  %v46 = vld [vmem:[%s2 + $0x78] sm:$0xff]
  %v47 = vld [vmem:[%s2 + $0x80] sm:$0xff]
  %v48 = vld [vmem:[%s2 + $0x88] sm:$0xff]
  %v49 = vld [vmem:[%s2 + $0x90] sm:$0xff]
  %v50 = vld [vmem:[%s2 + $0x98] sm:$0xff]
  %v51 = vld [vmem:[%s2 + $0xa0] sm:$0xff]
  %v52 = vld [vmem:[%s2 + $0xa8] sm:$0xff]
  %v53 = vld [vmem:[%s2 + $0xb0] sm:$0xff]
  %v54 = vld [vmem:[%s2 + $0xb8] sm:$0xff]
  %v55 = vld [vmem:[%s2 + $0xc0] sm:$0xff]
  %v56 = vld [vmem:[%s2 + $0xc8] sm:$0xff]
  %v57 = vld [vmem:[%s2 + $0xd0] sm:$0xff]
  %v58 = vld [vmem:[%s2 + $0xd8] sm:$0xff]
  %v59 = vld [vmem:[%s2 + $0xe0] sm:$0xff]
  %v60 = vld [vmem:[%s2 + $0xe8] sm:$0xff]
  %v61 = vld [vmem:[%s2 + $0xf0] sm:$0xff]
  %v62 = vld [vmem:[%s2 + $0xf8] sm:$0xff]
  %v63 = vld [vmem:[%s2 + $0x100] sm:$0xff]
  %v64 = vld [vmem:[%s2 + $0x108] sm:$0xff]
  %v65 = vld [vmem:[%s2 + $0x110] sm:$0xff]
  %v66 = vld [vmem:[%s2 + $0x118] sm:$0xff]
  %v67 = vld [vmem:[%s2 + $0x120] sm:$0xff]
  %v68 = vld [vmem:[%s2 + $0x128] sm:$0xff]
  %v69 = vld [vmem:[%s2 + $0x130] sm:$0xff]
  %v70 = vld [vmem:[%s2 + $0x138] sm:$0xff]
  %v71 = vld [vmem:[%s2 + $0x140] sm:$0xff]
  %v72 = vld [vmem:[%s2 + $0x148] sm:$0xff]
  %v73 = vld [vmem:[%s2 + $0x150] sm:$0xff]
  %v74 = vld [vmem:[%s2 + $0x158] sm:$0xff]
  %v75 = vld [vmem:[%s2 + $0x160] sm:$0xff]
  %v76 = vld [vmem:[%s2 + $0x168] sm:$0xff]
  %v77 = vld [vmem:[%s2 + $0x170] sm:$0xff]
  %v78 = vld [vmem:[%s2 + $0x178] sm:$0xff]
  %v79 = vld [vmem:[%s2 + $0x180] sm:$0xff]
  %v80 = vld [vmem:[%s2 + $0x188] sm:$0xff]
  %v81 = vld [vmem:[%s2 + $0x190] sm:$0xff]
  %v82 = vld [vmem:[%s2 + $0x198] sm:$0xff]
  %v83 = vld [vmem:[%s2 + $0x1a0] sm:$0xff]
  %v84 = vld [vmem:[%s2 + $0x1a8] sm:$0xff]
  %v85 = vld [vmem:[%s2 + $0x1b0] sm:$0xff]
  %v86 = vld [vmem:[%s2 + $0x1b8] sm:$0xff]
  %v87 = vld [vmem:[%s2 + $0x1c0] sm:$0xff]
  %v88 = vld [vmem:[%s2 + $0x1c8] sm:$0xff]
  %v89 = vld [vmem:[%s2 + $0x1d0] sm:$0xff]
  %v90 = vld [vmem:[%s2 + $0x1d8] sm:$0xff]
  %v91 = vld [vmem:[%s2 + $0x1e0] sm:$0xff]
  %v92 = vld [vmem:[%s2 + $0x1e8] sm:$0xff]
  %v93 = vld [vmem:[%s2 + $0x1f0] sm:$0xff]
  %v94 = vld [vmem:[%s2 + $0x1f8] sm:$0xff]
  %v95 = vld [vmem:[%s3] sm:$0xf]
  %v97 = vperm.slane %v95, 0
  %v98 = vperm.slane %v95, 1
  %v99 = vperm.slane %v95, 2
  %v100 = vperm.slane %v95, 3
  %vm105 = vcmask 523264
  %v107 = vsel %vm105, %v29, 0
  %v110 = vsel %vm105, %v30, 0
  %v113 = vsel %vm105, %v31, 0
  %v116 = vsel %vm105, %v32, 0
  %v119 = vsel %vm105, %v33, 0
  %v122 = vsel %vm105, %v34, 0
  %v125 = vsel %vm105, %v35, 0
  %v128 = vsel %vm105, %v36, 0
  %v131 = vsel %vm105, %v37, 0
  %v134 = vsel %vm105, %v38, 0
  %v137 = vsel %vm105, %v39, 0
  %v140 = vsel %vm105, %v40, 0
  %v143 = vsel %vm105, %v41, 0
  %v146 = vsel %vm105, %v42, 0
  %v149 = vsel %vm105, %v43, 0
  %v152 = vsel %vm105, %v44, 0
  %v155 = vsel %vm105, %v45, 0
  %v158 = vsel %vm105, %v46, 0
  %v161 = vsel %vm105, %v47, 0
  %v164 = vsel %vm105, %v48, 0
  %v167 = vsel %vm105, %v49, 0
  %v170 = vsel %vm105, %v50, 0
  %v173 = vsel %vm105, %v51, 0
  %v176 = vsel %vm105, %v52, 0
  %v179 = vsel %vm105, %v53, 0
  %v182 = vsel %vm105, %v54, 0
  %v185 = vsel %vm105, %v55, 0
  %v188 = vsel %vm105, %v56, 0
  %v191 = vsel %vm105, %v57, 0
  %v194 = vsel %vm105, %v58, 0
  %v197 = vsel %vm105, %v59, 0
  %v200 = vsel %vm105, %v60, 0
  %v203 = vsel %vm105, %v61, 0
  %v206 = vsel %vm105, %v62, 0
  %v209 = vsel %vm105, %v63, 0
  %v212 = vsel %vm105, %v64, 0
  %v215 = vsel %vm105, %v65, 0
  %v218 = vsel %vm105, %v66, 0
  %v221 = vsel %vm105, %v67, 0
  %v224 = vsel %vm105, %v68, 0
  %v227 = vsel %vm105, %v69, 0
  %v230 = vsel %vm105, %v70, 0
  %v233 = vsel %vm105, %v71, 0
  %v236 = vsel %vm105, %v72, 0
  %v239 = vsel %vm105, %v73, 0
  %v242 = vsel %vm105, %v74, 0
  %v245 = vsel %vm105, %v75, 0
  %v248 = vsel %vm105, %v76, 0
  %v251 = vsel %vm105, %v77, 0
  %v254 = vsel %vm105, %v78, 0
  %v257 = vsel %vm105, %v79, 0
  %v260 = vsel %vm105, %v80, 0
  %v263 = vsel %vm105, %v81, 0
  %v266 = vsel %vm105, %v82, 0
  %v269 = vsel %vm105, %v83, 0
  %v272 = vsel %vm105, %v84, 0
  %v275 = vsel %vm105, %v85, 0
  %v278 = vsel %vm105, %v86, 0
  %v281 = vsel %vm105, %v87, 0
  %v284 = vsel %vm105, %v88, 0
  %v287 = vsel %vm105, %v89, 0
  %v290 = vsel %vm105, %v90, 0
  %v293 = vsel %vm105, %v91, 0
  %v296 = vsel %vm105, %v92, 0
  %v299 = vsel %vm105, %v93, 0
  %v302 = vsel %vm105, %v94, 0
  %304 = vmatpush.xpose.msra.mxu0 %v158
  %305 = vmatpush.xpose.msra.mxu0 %v155
  %306 = vmatpush.xpose.msra.mxu0 %v152
  %307 = vmatpush.xpose.msra.mxu0 %v149
  %308 = vmatpush.xpose.msra.mxu0 %v146
  %309 = vmatpush.xpose.msra.mxu0 %v143
  %310 = vmatpush.xpose.msra.mxu0 %v140
  %311 = vmatpush.xpose.msra.mxu0 %v137
  %312 = vmatpush.xpose.msra.mxu0 %v134
  %313 = vmatpush.xpose.msra.mxu0 %v131
  %314 = vmatpush.xpose.msra.mxu0 %v128
  %315 = vmatpush.xpose.msra.mxu0 %v125
  %316 = vmatpush.xpose.msra.mxu0 %v122
  %317 = vmatpush.xpose.msra.mxu0 %v119
  %318 = vmatpush.xpose.msra.mxu0 %v116
  %319 = vmatpush.xpose.msra.mxu0 %v113
  %320 = vmatmul.f32.gmra.mxu0 %v107
  %v321 = vpop.f32.mrf.mxu0
  %v322 = vadd.f32 %v97, %v321
  %323 = vmatmul.f32.gmra.mxu0 %v110
  %v324 = vpop.f32.mrf.mxu0
  %v325 = vadd.f32 %v97, %v324
  %326 = vdwg.mxu0
  %327 = vmatpush.xpose.msra.mxu0 %v206
  %328 = vmatpush.xpose.msra.mxu0 %v203
  %329 = vmatpush.xpose.msra.mxu0 %v200
  %330 = vmatpush.xpose.msra.mxu0 %v197
  %331 = vmatpush.xpose.msra.mxu0 %v194
  %332 = vmatpush.xpose.msra.mxu0 %v191
  %333 = vmatpush.xpose.msra.mxu0 %v188
  %334 = vmatpush.xpose.msra.mxu0 %v185
  %335 = vmatpush.xpose.msra.mxu0 %v182
  %336 = vmatpush.xpose.msra.mxu0 %v179
  %337 = vmatpush.xpose.msra.mxu0 %v176
  %338 = vmatpush.xpose.msra.mxu0 %v173
  %339 = vmatpush.xpose.msra.mxu0 %v170
  %340 = vmatpush.xpose.msra.mxu0 %v167
  %341 = vmatpush.xpose.msra.mxu0 %v164
  %342 = vmatpush.xpose.msra.mxu0 %v161
  %343 = vmatmul.f32.gmra.mxu0 %v107
  %v344 = vpop.f32.mrf.mxu0
  %v345 = vadd.f32 %v98, %v344
  %346 = vmatmul.f32.gmra.mxu0 %v110
  %v347 = vpop.f32.mrf.mxu0
  %v348 = vadd.f32 %v98, %v347
  %349 = vdwg.mxu0
  %350 = vmatpush.xpose.msra.mxu0 %v254
  %351 = vmatpush.xpose.msra.mxu0 %v251
  %352 = vmatpush.xpose.msra.mxu0 %v248
  %353 = vmatpush.xpose.msra.mxu0 %v245
  %354 = vmatpush.xpose.msra.mxu0 %v242
  %355 = vmatpush.xpose.msra.mxu0 %v239
  %356 = vmatpush.xpose.msra.mxu0 %v236
  %357 = vmatpush.xpose.msra.mxu0 %v233
  %358 = vmatpush.xpose.msra.mxu0 %v230
  %359 = vmatpush.xpose.msra.mxu0 %v227
  %360 = vmatpush.xpose.msra.mxu0 %v224
  %361 = vmatpush.xpose.msra.mxu0 %v221
  %362 = vmatpush.xpose.msra.mxu0 %v218
  %363 = vmatpush.xpose.msra.mxu0 %v215
  %364 = vmatpush.xpose.msra.mxu0 %v212
  %365 = vmatpush.xpose.msra.mxu0 %v209
  %366 = vmatmul.f32.gmra.mxu0 %v107
  %v367 = vpop.f32.mrf.mxu0
  %v368 = vadd.f32 %v99, %v367
  %369 = vmatmul.f32.gmra.mxu0 %v110
  %v370 = vpop.f32.mrf.mxu0
  %v371 = vadd.f32 %v99, %v370
  %372 = vdwg.mxu0
  %373 = vmatpush.xpose.msra.mxu0 %v302
  %374 = vmatpush.xpose.msra.mxu0 %v299
  %375 = vmatpush.xpose.msra.mxu0 %v296
  %376 = vmatpush.xpose.msra.mxu0 %v293
  %377 = vmatpush.xpose.msra.mxu0 %v290
  %378 = vmatpush.xpose.msra.mxu0 %v287
  %379 = vmatpush.xpose.msra.mxu0 %v284
  %380 = vmatpush.xpose.msra.mxu0 %v281
  %381 = vmatpush.xpose.msra.mxu0 %v278
  %382 = vmatpush.xpose.msra.mxu0 %v275
  %383 = vmatpush.xpose.msra.mxu0 %v272
  %384 = vmatpush.xpose.msra.mxu0 %v269
  %385 = vmatpush.xpose.msra.mxu0 %v266
  %386 = vmatpush.xpose.msra.mxu0 %v263
  %387 = vmatpush.xpose.msra.mxu0 %v260
  %388 = vmatpush.xpose.msra.mxu0 %v257
  %389 = vmatmul.f32.gmra.mxu0 %v107
  %v390 = vpop.f32.mrf.mxu0
  %v391 = vadd.f32 %v100, %v390
  %392 = vmatmul.f32.gmra.mxu0 %v110
  %v393 = vpop.f32.mrf.mxu0
  %v394 = vadd.f32 %v100, %v393
  %395 = vdwg.mxu0
  %v396 = vld [vmem:[%s0] sm:$0xff]
  %v397 = vld [vmem:[%s0 + $0x8] sm:$0xff]
  %v398 = vlaneseq
  %v399 = vand.u32 %v398, 127
  %v400 = vadd.s32 %v399, 128
  %v401 = vadd.s32 %v399, 256
  %v402 = vadd.s32 %v399, 384
  %v403 = vstv %s17
  %v404 = vadd.s32 %v399, %v403
  %v405 = vadd.s32 %v400, %v403
  %v406 = vadd.s32 %v401, %v403
  %v407 = vadd.s32 %v402, %v403
  %408 = vset.pattern.permute.xlu0 0
  %409 = vperm.xlu0 %408, %v396
  %v410 = vpop.permute.xlu0 %409
  %411 = vset.pattern.permute.xlu0 0
  %412 = vperm.xlu0 %411, %v397
  %v413 = vpop.permute.xlu0 %412
  %vm414 = vcmp.eq.s32.totalorder %v404, %v410
  %vm415 = vcmp.eq.s32.totalorder %v405, %v410
  %vm416 = vcmp.eq.s32.totalorder %v406, %v410
  %vm417 = vcmp.eq.s32.totalorder %v407, %v410
  %vm418 = vcmp.eq.s32.totalorder %v404, %v413
  %vm419 = vcmp.eq.s32.totalorder %v405, %v413
  %vm420 = vcmp.eq.s32.totalorder %v406, %v413
  %vm421 = vcmp.eq.s32.totalorder %v407, %v413
  %v422 = vld [vmem:[#allocation4] sm:$0xff]
  %v423 = vld [vmem:[#allocation4 + $0x8] sm:$0xff]
  %v424 = vsel %vm414, %v322, 0.0
  %v425 = vsel %vm415, %v345, 0.0
  %v426 = vsel %vm416, %v368, 0.0
  %v427 = vsel %vm417, %v391, 0.0
  %v428 = vsel %vm418, %v325, 0.0
  %v429 = vsel %vm419, %v348, 0.0
  %v430 = vsel %vm420, %v371, 0.0
  %v431 = vsel %vm421, %v394, 0.0
  %v432 = vadd.f32 %v424, %v425
  %v433 = vadd.f32 %v432, %v426
  %v434 = vadd.f32 %v433, %v427
  %435 = vadd.xlane.f32.xlu0 %v434
  %v436 = vpop.xlane.xlu0 %435
  %v437 = vadd.f32 %v428, %v429
  %v438 = vadd.f32 %v437, %v430
  %v439 = vadd.f32 %v438, %v431
  %440 = vadd.xlane.f32.xlu0 %v439
  %v441 = vpop.xlane.xlu0 %440
  %v442 = vadd.f32 %v422, %v436
  %v443 = vadd.f32 %v423, %v441
  %vm444 = vcmask 7168
  %445 = vst.msk [vmem:[#allocation4] sm:$0xff] %vm444, %v442
  %446 = vst.msk [vmem:[#allocation4 + $0x8] sm:$0xff] %vm444, %v443
  %v447 = vld [vmem:[#allocation2] sm:$0xff]
  %v448 = vld [vmem:[#allocation2 + $0x8] sm:$0xff]
  %v449 = vmax.f32 %v322, %v368
  %v450 = vmax.f32 %v345, %v391
  %v451 = vmax.f32 %v449, %v450
  %452 = vmax.xlane.f32.xlu0 %v451
  %v453 = vpop.xlane.xlu0 %452
  %v454 = vmax.f32 %v325, %v371
  %v455 = vmax.f32 %v348, %v394
  %v456 = vmax.f32 %v454, %v455
  %457 = vmax.xlane.f32.xlu0 %v456
  %v458 = vpop.xlane.xlu0 %457
  %v459 = vmax.f32 %v447, %v453
  %v460 = vmax.f32 %v448, %v458
  %v461 = vld [vmem:[#allocation3] sm:$0xff]
  %v462 = vld [vmem:[#allocation3 + $0x8] sm:$0xff]
  %v463 = vsub.f32 %v447, %v459
  %v464 = vsub.f32 %v448, %v460
  %v465 = vmul.f32 %v463, 1.442695
  %v466 = vpow.pop %v465
  %v467 = vmul.f32 %v464, 1.442695
  %v468 = vpow.pop %v467
  %v469 = vmul.f32 %v461, %v466
  %v470 = vmul.f32 %v462, %v468
  %472 = vset.pattern.permute.xlu0 0
  %473 = vperm.xlu0 %472, %v459
  %v474 = vpop.permute.xlu0 %473
  %477 = vset.pattern.permute.xlu0 0
  %478 = vperm.xlu0 %477, %v460
  %v479 = vpop.permute.xlu0 %478
  %v481 = vsub.f32 %v322, %v474
  %v482 = vsub.f32 %v345, %v474
  %v483 = vsub.f32 %v368, %v474
  %v484 = vsub.f32 %v391, %v474
  %v485 = vsub.f32 %v325, %v479
  %v486 = vsub.f32 %v348, %v479
  %v487 = vsub.f32 %v371, %v479
  %v488 = vsub.f32 %v394, %v479
  %v489 = vmul.f32 %v481, 1.442695
  %v490 = vpow.pop %v489
  %v491 = vmul.f32 %v482, 1.442695
  %v492 = vpow.pop %v491
  %v493 = vmul.f32 %v483, 1.442695
  %v494 = vpow.pop %v493
  %v495 = vmul.f32 %v484, 1.442695
  %v496 = vpow.pop %v495
  %v497 = vmul.f32 %v485, 1.442695
  %v498 = vpow.pop %v497
  %v499 = vmul.f32 %v486, 1.442695
  %v500 = vpow.pop %v499
  %v501 = vmul.f32 %v487, 1.442695
  %v502 = vpow.pop %v501
  %v503 = vmul.f32 %v488, 1.442695
  %v504 = vpow.pop %v503
  %v505 = vadd.f32 %v490, %v492
  %v506 = vadd.f32 %v505, %v494
  %v507 = vadd.f32 %v506, %v496
  %508 = vadd.xlane.f32.xlu0 %v507
  %v509 = vpop.xlane.xlu0 %508
  %v510 = vadd.f32 %v498, %v500
  %v511 = vadd.f32 %v510, %v502
  %v512 = vadd.f32 %v511, %v504
  %513 = vadd.xlane.f32.xlu0 %v512
  %v514 = vpop.xlane.xlu0 %513
  %v515 = vadd.f32 %v469, %v509
  %v516 = vadd.f32 %v470, %v514
  %517 = vst.msk [vmem:[#allocation3] sm:$0xff] %vm444, %v515
  %518 = vst.msk [vmem:[#allocation3 + $0x8] sm:$0xff] %vm444, %v516
  %519 = vst.msk [vmem:[#allocation2] sm:$0xff] %vm444, %v459
  %520 = vst.msk [vmem:[#allocation2 + $0x8] sm:$0xff] %vm444, %v460
  // Predicated region
  $region22: #{tpu_custom_call.1} parent=0 // pred_check
    %p521 = pneg %p18
  $region23: #{tpu_custom_call.1} parent=0 // pred_check_branch
    %523 = sbr.rel (%p521) target = $region25
  $region24: #{tpu_custom_call.1} parent=0 // pred_region
    %v524 = vld [vmem:[#allocation3] sm:$0xff]
    %v525 = vld [vmem:[#allocation3 + $0x8] sm:$0xff]
    %v526 = vlog2.pop %v524
    %v527 = vmul.f32 %v526, 0.6931472
    %v528 = vlog2.pop %v525
    %v529 = vmul.f32 %v528, 0.6931472
    %v530 = vld [vmem:[#allocation2] sm:$0xff]
    %v531 = vld [vmem:[#allocation2 + $0x8] sm:$0xff]
    %v532 = vadd.f32 %v527, %v530
    %v533 = vadd.f32 %v529, %v531
    %v534 = vld [vmem:[#allocation4] sm:$0xff]
    %v535 = vld [vmem:[#allocation4 + $0x8] sm:$0xff]
    %v536 = vsub.f32 %v532, %v534
    %v537 = vsub.f32 %v533, %v535
    %vm538 = vcmp.eq.s32.totalorder %v396, 4294967196
    %vm539 = vcmp.eq.s32.totalorder %v397, 4294967196
    %v540 = vsel %vm538, 0.0, %v536
    %v541 = vsel %vm539, 0.0, %v537
    %542 = vst.msk [vmem:[%s4] sm:$0xff] %vm444, %v540
    %543 = vst.msk [vmem:[%s4 + $0x8] sm:$0xff] %vm444, %v541
  $region25: #{tpu_custom_call.1} parent=0 // pred_fallthru
    _
  // Predicated region
  $region26: #{tpu_custom_call.1} parent=0 // pred_check
    _
  $region27: #{tpu_custom_call.1} parent=0 // pred_check_branch
    %545 = sbr.rel (0) target = $region29
  $region28: #{tpu_custom_call.1} parent=0 // pred_region
    _
  $region29: #{tpu_custom_call.1} parent=0 // pred_fallthru
    _
  // Predicated region
  $region30: #{tpu_custom_call.1} parent=0 // pred_check
    _
  $region31: #{tpu_custom_call.1} parent=0 // pred_check_branch
    %547 = sbr.rel (0) target = $region33
  $region32: #{tpu_custom_call.1} parent=0 // pred_region
    _
  $region33: #{tpu_custom_call.1} parent=0 // pred_fallthru
    _

</llo_original>
